<compile_context>
chip_gen: v7x
topology: tpu7x:2x2x1
jax: 0.10.0
libtpu: 0.0.40
codegen_flags: <defaults>
</compile_context>

<pallas_src>
import math
import jax
import jax.numpy as jnp
from jax.experimental import pallas as pl
from jax.experimental.pallas import tpu as pltpu


def _stat_ae_kernel(x_ref, we_ref, be_ref, wd_ref, bd_ref,
                    enc_ref, dec_ref, acc_ref):
    """Fused encoder + decoder.

    grid = (batch_tiles, 2, D_tiles); (i, p, k) = program ids.
      phase p==0 : acc += x[i, k-tile] @ We_t[k-tile, :]        (K reduction)
                   at k == last: acc += b_enc ; enc_ref <- acc
      phase p==1 : dec[i, k-tile] = acc @ Wd_t[:, k-tile] + b_dec[k-tile]
    The encoded activation (tb, E) stays in a f32 VMEM scratch for the whole
    batch tile, so no HBM round trip between the two matmuls.
    """
    p = pl.program_id(1)
    k = pl.program_id(2)
    nk = pl.num_programs(2)

    @pl.when(jnp.logical_and(p == 0, k == 0))
    def _init():
        acc_ref[...] = jnp.zeros_like(acc_ref)

    @pl.when(p == 0)
    def _encode_accumulate():
        acc_ref[...] += jnp.dot(x_ref[...], we_ref[...],
                                preferred_element_type=jnp.float32)

    @pl.when(jnp.logical_and(p == 0, k == nk - 1))
    def _finish_encode():
        enc = acc_ref[...] + be_ref[...]
        acc_ref[...] = enc
        enc_ref[...] = enc.astype(enc_ref.dtype)

    @pl.when(p == 1)
    def _decode():
        dec = jnp.dot(acc_ref[...].astype(wd_ref.dtype), wd_ref[...],
                      preferred_element_type=jnp.float32) + bd_ref[...]
        dec_ref[...] = dec.astype(dec_ref.dtype)


def _pick_tile(dim, candidates):
    """Largest candidate that evenly divides `dim`; else the full dim."""
    for c in candidates:
        if dim >= c and dim % c == 0:
            return c
    return dim


def stat_autoencoder_forward(x, we_t, b_enc, wd_t, b_dec,
                             *, compute_dtype=jnp.float32):
    """Pallas forward for StatAutoencoder.

    x     : (B, seq_length, input_dim) float32
    we_t  : (D, E)  encoder weight, pre-transposed once at init (D = seq*dim)
    b_enc : (E,)
    wd_t  : (E, D)  decoder weight, pre-transposed once at init
    b_dec : (D,)
    compute_dtype: jnp.float32 (default, matches PyTorch) or jnp.bfloat16
                   for higher MXU rate / halved weight bandwidth on v5e/v6e.
                   Accumulation and biases stay float32 either way.
    Returns (encoded (B, E) f32, decoded (B, seq_length, input_dim) f32).
    """
    B, seq_length, input_dim = x.shape
    D = seq_length * input_dim
    E = we_t.shape[1]
    assert we_t.shape == (D, E) and wd_t.shape == (E, D)
    assert b_enc.shape == (E,) and b_dec.shape == (D,)

    x_flat = x.reshape(B, D).astype(compute_dtype)       # same as torch .view
    we = we_t.astype(compute_dtype)
    wd = wd_t.astype(compute_dtype)
    be2d = b_enc.reshape(1, E).astype(jnp.float32)
    bd2d = b_dec.reshape(1, D).astype(jnp.float32)

    # Tile sizes: multiples of (8, 128) when possible, else full dim
    # (BlockSpec rule).  Sized so double-buffered weight tiles + (tb, E)
    # scratch stay well inside v7x's 64 MiB VMEM.
    tb = _pick_tile(B, (256, 128, 64, 32, 16, 8))
    td = _pick_tile(D, (512, 256, 128))
    nb = B // tb
    nk = D // td
    last = nk - 1

    in_specs = [
        # x: streamed over D in phase 0; held at the last block in phase 1
        # (same block index => no redundant DMA).
        pl.BlockSpec((tb, td), lambda i, p, k: (i, k * (1 - p) + last * p)),
        # encoder weight (D, E): streamed over D in phase 0, held in phase 1.
        pl.BlockSpec((td, E), lambda i, p, k: (k * (1 - p) + last * p, 0)),
        # encoder bias: resident.
        pl.BlockSpec((1, E), lambda i, p, k: (0, 0)),
        # decoder weight (E, D): held at block 0 in phase 0, streamed in phase 1.
        pl.BlockSpec((E, td), lambda i, p, k: (0, k * p)),
        # decoder bias: streamed with the decoder output tile.
        pl.BlockSpec((1, td), lambda i, p, k: (0, k * p)),
    ]
    out_specs = (
        # encoded (B, E): one resident block per batch tile, written at the
        # end of phase 0.
        pl.BlockSpec((tb, E), lambda i, p, k: (i, 0)),
        # decoded (B, D): lane-dense (tb, td) tiles written in phase 1;
        # pinned at block (i, 0) during phase 0 (written before index change).
        pl.BlockSpec((tb, td), lambda i, p, k: (i, k * p)),
    )

    flops = 4 * B * D * E                      # two (B,D)x(D,E)-sized matmuls
    bytes_accessed = 4 * (2 * B * D + B * E + 2 * D * E + E + D)

    enc_flat, dec_flat = pl.pallas_call(
        _stat_ae_kernel,
        out_shape=(jax.ShapeDtypeStruct((B, E), jnp.float32),
                   jax.ShapeDtypeStruct((B, D), jnp.float32)),
        grid_spec=pltpu.PrefetchScalarGridSpec(
            num_scalar_prefetch=0,
            grid=(nb, 2, nk),
            in_specs=in_specs,
            out_specs=out_specs,
            scratch_shapes=[pltpu.VMEM((tb, E), jnp.float32)],
        ),
        compiler_params=pltpu.CompilerParams(
            dimension_semantics=("parallel", "arbitrary", "arbitrary"),
            vmem_limit_bytes=48 * 1024 * 1024),
        cost_estimate=pl.CostEstimate(flops=flops, transcendentals=0,
                                      bytes_accessed=bytes_accessed),
    )(x_flat, we, be2d, wd, bd2d)

    decoded = dec_flat.reshape(B, seq_length, input_dim)
    return enc_flat, decoded


def init_params(key, n_steps, input_dim, encoding_dim):
    """nn.Linear-style init, with weights stored PRE-TRANSPOSED once
    (we_t: (D, E), wd_t: (E, D)) so no per-call transpose copies are needed."""
    D = n_steps * input_dim
    k1, k2, k3, k4 = jax.random.split(key, 4)
    bound_e = 1.0 / math.sqrt(D)
    bound_d = 1.0 / math.sqrt(encoding_dim)
    we_t = jax.random.uniform(k1, (D, encoding_dim), jnp.float32,
                              -bound_e, bound_e)
    b_enc = jax.random.uniform(k2, (encoding_dim,), jnp.float32,
                               -bound_e, bound_e)
    wd_t = jax.random.uniform(k3, (encoding_dim, D), jnp.float32,
                              -bound_d, bound_d)
    b_dec = jax.random.uniform(k4, (D,), jnp.float32,
                               -bound_d, bound_d)
    return we_t, b_enc, wd_t, b_dec


def _reference(x, we_t, b_enc, wd_t, b_dec):
    B, S, Di = x.shape
    xf = x.reshape(B, -1)
    enc = xf @ we_t + b_enc
    dec = (enc @ wd_t + b_dec).reshape(B, S, Di)
    return enc, dec


if __name__ == "__main__":
    key = jax.random.PRNGKey(0)

    # --- Test 1: module-implied small shapes (B=2, n_steps=8, dim=4, E=32) ---
    B, n_steps, input_dim, encoding_dim = 2, 8, 4, 32
    kx, kp, key = jax.random.split(key, 3)
    x = jax.random.normal(kx, (B, n_steps, input_dim), jnp.float32)
    params = init_params(kp, n_steps, input_dim, encoding_dim)

    encoded, decoded = stat_autoencoder_forward(x, *params)
    jax.block_until_ready((encoded, decoded))

    enc_ref, dec_ref = _reference(x, *params)
    assert jnp.allclose(encoded, enc_ref, atol=1e-4, rtol=1e-4)
    assert jnp.allclose(decoded, dec_ref, atol=1e-4, rtol=1e-4)

    # --- Test 2: exercises the tiled path (K reduction + decoder streaming) ---
    B2, n_steps2, input_dim2, E2 = 16, 32, 32, 128     # D = 1024 -> 2 D-tiles
    kx2, kp2 = jax.random.split(key)
    x2 = jax.random.normal(kx2, (B2, n_steps2, input_dim2), jnp.float32)
    params2 = init_params(kp2, n_steps2, input_dim2, E2)

    encoded2, decoded2 = stat_autoencoder_forward(x2, *params2)
    jax.block_until_ready((encoded2, decoded2))

    enc_ref2, dec_ref2 = _reference(x2, *params2)
    assert jnp.allclose(encoded2, enc_ref2, atol=1e-4, rtol=1e-4)
    assert jnp.allclose(decoded2, dec_ref2, atol=1e-4, rtol=1e-4)

    print("KERNEL_OK")
</pallas_src>

<mosaic_0001>
module attributes {stable_mosaic.version = 11 : i64} {
  func.func @_stat_ae_kernel(%arg0: i32, %arg1: i32, %arg2: i32, %arg3: memref<2x32xf32, #tpu.memory_space<vmem>>, %arg4: memref<32x32xf32, #tpu.memory_space<vmem>>, %arg5: memref<1x32xf32, #tpu.memory_space<vmem>>, %arg6: memref<32x32xf32, #tpu.memory_space<vmem>>, %arg7: memref<1x32xf32, #tpu.memory_space<vmem>>, %arg8: memref<2x32xf32, #tpu.memory_space<vmem>>, %arg9: memref<2x32xf32, #tpu.memory_space<vmem>>, %arg10: memref<2x32xf32, #tpu.memory_space<vmem>>) attributes {dimension_semantics = [#tpu.dimension_semantics<parallel>, #tpu.dimension_semantics<arbitrary>, #tpu.dimension_semantics<arbitrary>], iteration_bounds = array<i64: 1, 2, 1>, scalar_prefetch = 0 : i64, scratch_operands = 1 : i64, tpu.core_type = #tpu.core_type<tc>, window_params = [{transform_indices = @transform_0, window_bounds = array<i64: 2, 32>}, {transform_indices = @transform_1, window_bounds = array<i64: 32, 32>}, {pipeline_mode = #tpu.pipeline_mode<synchronous>, transform_indices = @transform_2, window_bounds = array<i64: 1, 32>}, {transform_indices = @transform_3, window_bounds = array<i64: 32, 32>}, {transform_indices = @transform_4, window_bounds = array<i64: 1, 32>}, {transform_indices = @transform_5, window_bounds = array<i64: 2, 32>}, {transform_indices = @transform_6, window_bounds = array<i64: 2, 32>}]} {
    %c0_i32 = arith.constant 0 : i32
    %0 = arith.cmpi eq, %arg1, %c0_i32 : i32
    %c0_i32_0 = arith.constant 0 : i32
    %1 = arith.cmpi eq, %arg2, %c0_i32_0 : i32
    %2 = arith.andi %0, %1 : i1
    %3 = arith.extui %2 : i1 to i32
    %c0_i32_1 = arith.constant 0 : i32
    %4 = arith.cmpi ne, %3, %c0_i32_1 : i32
    scf.if %4 {
      %cst = arith.constant 0.000000e+00 : f32
      %16 = vector.broadcast %cst : f32 to vector<2x32xf32>
      %c0 = arith.constant 0 : index
      %c0_8 = arith.constant 0 : index
      %17 = vector.load %arg10[%c0, %c0_8] : memref<2x32xf32, #tpu.memory_space<vmem>>, vector<2x32xf32>
      tpu.vector_store %arg10[%c0, %c0_8], %16 {strides = array<i32>} : memref<2x32xf32, #tpu.memory_space<vmem>>, vector<2x32xf32>,
    } else {
    }
    %c0_i32_2 = arith.constant 0 : i32
    %5 = arith.cmpi eq, %arg1, %c0_i32_2 : i32
    %6 = arith.extui %5 : i1 to i32
    %c0_i32_3 = arith.constant 0 : i32
    %7 = arith.cmpi ne, %6, %c0_i32_3 : i32
    scf.if %7 {
      %c0 = arith.constant 0 : index
      %c0_8 = arith.constant 0 : index
      %16 = vector.load %arg10[%c0, %c0_8] : memref<2x32xf32, #tpu.memory_space<vmem>>, vector<2x32xf32>
      %c0_9 = arith.constant 0 : index
      %c0_10 = arith.constant 0 : index
      %17 = vector.load %arg3[%c0_9, %c0_10] : memref<2x32xf32, #tpu.memory_space<vmem>>, vector<2x32xf32>
      %c0_11 = arith.constant 0 : index
      %c0_12 = arith.constant 0 : index
      %18 = vector.load %arg4[%c0_11, %c0_12] : memref<32x32xf32, #tpu.memory_space<vmem>>, vector<32x32xf32>
      %cst = arith.constant dense<0.000000e+00> : vector<2x32xf32>
      %19 = tpu.matmul %17, %18, %cst {dimension_numbers = #tpu.dot_dimension_numbers<[1], [0], [0], [1], [0, 0, 1, 1], [], []>} : vector<2x32xf32>, vector<32x32xf32>, vector<2x32xf32> -> vector<2x32xf32>
      %20 = arith.addf %16, %19 : vector<2x32xf32>
      %c0_13 = arith.constant 0 : index
      %c0_14 = arith.constant 0 : index
      %21 = vector.load %arg10[%c0_13, %c0_14] : memref<2x32xf32, #tpu.memory_space<vmem>>, vector<2x32xf32>
      tpu.vector_store %arg10[%c0_13, %c0_14], %20 {strides = array<i32>} : memref<2x32xf32, #tpu.memory_space<vmem>>, vector<2x32xf32>,
    } else {
    }
    %c0_i32_4 = arith.constant 0 : i32
    %8 = arith.cmpi eq, %arg1, %c0_i32_4 : i32
    %c0_i32_5 = arith.constant 0 : i32
    %9 = arith.cmpi eq, %arg2, %c0_i32_5 : i32
    %10 = arith.andi %8, %9 : i1
    %11 = arith.extui %10 : i1 to i32
    %c0_i32_6 = arith.constant 0 : i32
    %12 = arith.cmpi ne, %11, %c0_i32_6 : i32
    scf.if %12 {
      %c0 = arith.constant 0 : index
      %c0_8 = arith.constant 0 : index
      %16 = vector.load %arg10[%c0, %c0_8] : memref<2x32xf32, #tpu.memory_space<vmem>>, vector<2x32xf32>
      %c0_9 = arith.constant 0 : index
      %c0_10 = arith.constant 0 : index
      %17 = vector.load %arg5[%c0_9, %c0_10] : memref<1x32xf32, #tpu.memory_space<vmem>>, vector<1x32xf32>
      %18 = vector.broadcast %17 : vector<1x32xf32> to vector<2x32xf32>
      %19 = arith.addf %16, %18 : vector<2x32xf32>
      %c0_11 = arith.constant 0 : index
      %c0_12 = arith.constant 0 : index
      %20 = vector.load %arg10[%c0_11, %c0_12] : memref<2x32xf32, #tpu.memory_space<vmem>>, vector<2x32xf32>
      tpu.vector_store %arg10[%c0_11, %c0_12], %19 {strides = array<i32>} : memref<2x32xf32, #tpu.memory_space<vmem>>, vector<2x32xf32>,
      %c0_13 = arith.constant 0 : index
      %c0_14 = arith.constant 0 : index
      %21 = vector.load %arg8[%c0_13, %c0_14] : memref<2x32xf32, #tpu.memory_space<vmem>>, vector<2x32xf32>
      tpu.vector_store %arg8[%c0_13, %c0_14], %19 {strides = array<i32>} : memref<2x32xf32, #tpu.memory_space<vmem>>, vector<2x32xf32>,
    } else {
    }
    %c1_i32 = arith.constant 1 : i32
    %13 = arith.cmpi eq, %arg1, %c1_i32 : i32
    %14 = arith.extui %13 : i1 to i32
    %c0_i32_7 = arith.constant 0 : i32
    %15 = arith.cmpi ne, %14, %c0_i32_7 : i32
    scf.if %15 {
      %c0 = arith.constant 0 : index
      %c0_8 = arith.constant 0 : index
      %16 = vector.load %arg10[%c0, %c0_8] : memref<2x32xf32, #tpu.memory_space<vmem>>, vector<2x32xf32>
      %c0_9 = arith.constant 0 : index
      %c0_10 = arith.constant 0 : index
      %17 = vector.load %arg6[%c0_9, %c0_10] : memref<32x32xf32, #tpu.memory_space<vmem>>, vector<32x32xf32>
      %cst = arith.constant dense<0.000000e+00> : vector<2x32xf32>
      %18 = tpu.matmul %16, %17, %cst {dimension_numbers = #tpu.dot_dimension_numbers<[1], [0], [0], [1], [0, 0, 1, 1], [], []>} : vector<2x32xf32>, vector<32x32xf32>, vector<2x32xf32> -> vector<2x32xf32>
      %c0_11 = arith.constant 0 : index
      %c0_12 = arith.constant 0 : index
      %19 = vector.load %arg7[%c0_11, %c0_12] : memref<1x32xf32, #tpu.memory_space<vmem>>, vector<1x32xf32>
      %20 = vector.broadcast %19 : vector<1x32xf32> to vector<2x32xf32>
      %21 = arith.addf %18, %20 : vector<2x32xf32>
      %c0_13 = arith.constant 0 : index
      %c0_14 = arith.constant 0 : index
      %22 = vector.load %arg9[%c0_13, %c0_14] : memref<2x32xf32, #tpu.memory_space<vmem>>, vector<2x32xf32>
      tpu.vector_store %arg9[%c0_13, %c0_14], %21 {strides = array<i32>} : memref<2x32xf32, #tpu.memory_space<vmem>>, vector<2x32xf32>,
    } else {
    }
    return
  }
  func.func @transform_0(%arg0: i32, %arg1: i32, %arg2: i32) -> (i32, i32) {
    %c1_i32 = arith.constant 1 : i32
    %0 = arith.subi %c1_i32, %arg1 : i32
    %1 = arith.muli %arg2, %0 : i32
    %c0_i32 = arith.constant 0 : i32
    %2 = arith.muli %c0_i32, %arg1 : i32
    %3 = arith.addi %1, %2 : i32
    %c0_i32_0 = arith.constant 0 : i32
    return %arg0, %3 : i32, i32
  }
  func.func @transform_1(%arg0: i32, %arg1: i32, %arg2: i32) -> (i32, i32) {
    %c1_i32 = arith.constant 1 : i32
    %0 = arith.subi %c1_i32, %arg1 : i32
    %1 = arith.muli %arg2, %0 : i32
    %c0_i32 = arith.constant 0 : i32
    %2 = arith.muli %c0_i32, %arg1 : i32
    %3 = arith.addi %1, %2 : i32
    %c0_i32_0 = arith.constant 0 : i32
    %c0_i32_1 = arith.constant 0 : i32
    return %3, %c0_i32_0 : i32, i32
  }
  func.func @transform_2(%arg0: i32, %arg1: i32, %arg2: i32) -> (i32, i32) {
    %c0_i32 = arith.constant 0 : i32
    %c0_i32_0 = arith.constant 0 : i32
    %c0_i32_1 = arith.constant 0 : i32
    return %c0_i32, %c0_i32_0 : i32, i32
  }
  func.func @transform_3(%arg0: i32, %arg1: i32, %arg2: i32) -> (i32, i32) {
    %0 = arith.muli %arg2, %arg1 : i32
    %c0_i32 = arith.constant 0 : i32
    %c0_i32_0 = arith.constant 0 : i32
    return %c0_i32, %0 : i32, i32
  }
  func.func @transform_4(%arg0: i32, %arg1: i32, %arg2: i32) -> (i32, i32) {
    %0 = arith.muli %arg2, %arg1 : i32
    %c0_i32 = arith.constant 0 : i32
    %c0_i32_0 = arith.constant 0 : i32
    return %c0_i32, %0 : i32, i32
  }
  func.func @transform_5(%arg0: i32, %arg1: i32, %arg2: i32) -> (i32, i32) {
    %c0_i32 = arith.constant 0 : i32
    %c0_i32_0 = arith.constant 0 : i32
    return %arg0, %c0_i32 : i32, i32
  }
  func.func @transform_6(%arg0: i32, %arg1: i32, %arg2: i32) -> (i32, i32) {
    %0 = arith.muli %arg2, %arg1 : i32
    %c0_i32 = arith.constant 0 : i32
    return %arg0, %0 : i32, i32
  }
}

</mosaic_0001>

<llo_original>
// kernel: tpu_custom_call.1
$region0: #{tpu_custom_call.1}
  #allocation0 [shape = 'u32[]', space=smem, size = 0x4, offset = 0x4, fixed_abs, tag = 'smem constant byte address 0x4 - core index']
  #allocation1 [shape = 'u32[144,128]{1,0:T(1,128)}', space=vmem, size = 0x12000, scoped, tag = 'internal scratch']
  #allocation2 [shape = 'f32[2,32]{1,0:T(2,128)}', space=vmem, size = 0x400, scoped, tag = 'scratch operand']
  %s0 = inlined_call_operand.hbm [shape: f32[2,32], index: 0, kind: input, shape index: {}]
  %s1 = inlined_call_operand.hbm [shape: f32[32,32], index: 1, kind: input, shape index: {}]
  %s2 = inlined_call_operand.vmem [shape: f32[1,32], index: 2, kind: input, shape index: {}]
  %s3 = inlined_call_operand.hbm [shape: f32[32,32], index: 3, kind: input, shape index: {}]
  %s4 = inlined_call_operand.vmem [shape: f32[1,32], index: 4, kind: input, shape index: {}]
  %s5 = inlined_call_operand.hbm [shape: f32[2,32], index: 5, kind: output, shape index: {0}]
  %s6 = inlined_call_operand.hbm [shape: f32[2,32], index: 6, kind: output, shape index: {1}]
  %7 = xla_tuple %s5, %s6
  %s8 = sld [smem:[#allocation0]]
  $region89: #{tpu_custom_call.1} parent=0
    _
  %s10 = ssub.s32 1, %s8
  %s11 = scalar_select 0, %s10, %s8
  $region1: #{tpu_custom_call.1} parent=0
    #allocation3 [shape = 'u8[2048]{0}', space=vmem, size = 0x800, scoped, tag = 'input window, operand 0']
    #allocation4 [shape = 's32[2]{0}', space=sflag, size = 0x8, scoped, tag = 'scoped memory for tpu_custom_call.1']
    #allocation5 [shape = 's32[2]{0}', space=sflag, size = 0x8, scoped, tag = 'scoped memory for tpu_custom_call.1']
    #allocation6 [shape = 'u8[32768]{0}', space=vmem, size = 0x8000, scoped, tag = 'input window, operand 1']
    #allocation7 [shape = 's32[2]{0}', space=sflag, size = 0x8, scoped, tag = 'scoped memory for tpu_custom_call.1']
    #allocation8 [shape = 'u8[32768]{0}', space=vmem, size = 0x8000, scoped, tag = 'input window, operand 3']
    #allocation9 [shape = 'u8[1024]{0}', space=vmem, size = 0x400, scoped, tag = 'output window, operand 0, single buffered']
    #allocation10 [shape = 'u8[2048]{0}', space=vmem, size = 0x800, scoped, tag = 'output window, operand 1']
    #allocation11 [shape = 's32[2]{0}', space=sflag, size = 0x8, scoped, tag = 'scoped memory for tpu_custom_call.1']
    %12 = vsyncpa [#allocation4], 0
    %s13 = scalar_lea.sflag [#allocation4], 1
    %14 = vsyncpa %s13, 0
    %15 = vsyncpa [#allocation7], 0
    %s16 = scalar_lea.sflag [#allocation7], 1
    %17 = vsyncpa %s16, 0
    %18 = vsyncpa [#allocation5], 0
    %19 = vsyncpa [#allocation11], 0
    %s20 = scalar_lea.sflag [#allocation11], 1
    %21 = vsyncpa %s20, 0
    loop: start=0, step=1, limit=4
    $region2: #{tpu_custom_call.1} parent=1 // loop_pre_header
      _
    $region3: #{tpu_custom_call.1} parent=1 // loop_header
      %s23 = sphi 0, %s27
      %p24 = scmp.ge.s32.totalorder %s23, 4
      %s30 = sphi 0, %s49
      %s31 = sphi 0, %s45
      %s32 = sphi 0, %s41
      %s33 = sphi 0, %s30
      %s34 = sphi 0, %s31
      %s35 = sphi 0, %s32
      %s36 = sphi 0, %s33
      %s37 = sphi 0, %s34
      %s38 = sphi 0, %s35
      %s58 = sphi 0, %s60
      %s61 = sphi 0, %s58
      %s62 = sphi 0, %s61
      %s78 = sphi 0, %s62
      %s88 = sphi 0, %s90
      %s91 = sphi 0, %s88
      %s92 = sphi 0, %s91
      %s108 = sphi 0, %s92
      %s112 = sphi 0, %s112
      %s114 = sphi 0, %s112
      %s115 = sphi 0, %s114
      %s129 = sphi 0, %s115
      %s137 = sphi 0, %s139
      %s140 = sphi 0, %s137
      %s141 = sphi 0, %s140
      %s157 = sphi 0, %s141
      %s165 = sphi 0, %s167
      %s168 = sphi 0, %s165
      %s169 = sphi 0, %s168
      %s185 = sphi 0, %s169
      %s191 = sphi 0, %s193
      %s194 = sphi 0, %s191
      %s195 = sphi 0, %s194
      %s211 = sphi 0, %s195
      %s221 = sphi 0, %s223
      %s224 = sphi 0, %s221
      %s225 = sphi 0, %s224
      %s241 = sphi 0, %s225
    $region4: #{tpu_custom_call.1} parent=1 // loop_header_branch
      %26 = sbr.rel (%p24) target = $region8
    $region5: #{tpu_custom_call.1} parent=1 // loop_body
      %s28 = ssub.s32 %s23, 1
      %s29 = ssub.s32 %s23, 2
      %s39 = sadd.s32 1, %s32
      %p40 = scmp.ge.s32.totalorder %s39, 1
      %s41 = scalar_select %p40, 0, %s39
      %s42 = sadd.s32 1, %s31
      %s43 = scalar_select %p40, %s42, %s31
      %p44 = scmp.ge.s32.totalorder %s43, 2
      %s45 = scalar_select %p44, 0, %s43
      %s46 = sadd.s32 1, %s30
      %s47 = scalar_select %p44, %s46, %s30
      %p48 = scmp.ge.s32.totalorder %s47, 1
      %s49 = scalar_select %p48, 0, %s47
      %s50 = ssub.s32 1, %s31
      %s51 = smul.u32 %s32, %s50
      %s52 = ssub.s32 1, %s45
      %s53 = smul.u32 %s41, %s52
      %s54 = ssub.s32 %s30, %s49
      %s55 = ssub.s32 %s51, %s53
      %s56 = sor.u32 %s54, %s55
      %p57 = scmp.eq.s32.totalorder %s56, 0
      %s59 = sadd.s32 %s58, 1
      %s60 = scalar_select %p57, %s58, %s59
      %p63 = pneg %p57
      %p64 = scmp.eq.s32.totalorder %s23, 1
      %p65 = por %p63, %p64
      %p66 = scmp.ne.s32.totalorder %s58, %s61
      %p67 = scmp.eq.s32.totalorder %s23, 0
      %p68 = por %p66, %p67
      %p69 = scmp.ne.s32.totalorder %s58, %s61
      %p70 = scmp.eq.s32.totalorder %s28, 1
      %p71 = por %p69, %p70
      %p72 = scmp.ne.s32.totalorder %s61, %s62
      %p73 = scmp.eq.s32.totalorder %s28, 0
      %p74 = por %p72, %p73
      %p75 = scmp.ne.s32.totalorder %s61, %s62
      %p76 = scmp.eq.s32.totalorder %s29, 1
      %p77 = por %p75, %p76
      %p79 = scmp.ne.s32.totalorder %s62, %s78
      %p80 = scmp.eq.s32.totalorder %s29, 0
      %p81 = por %p79, %p80
      %s82 = ssub.s32 1, %s31
      %s83 = smul.u32 %s32, %s82
      %s84 = ssub.s32 1, %s45
      %s85 = smul.u32 %s41, %s84
      %s86 = ssub.s32 %s83, %s85
      %p87 = scmp.eq.s32.totalorder %s86, 0
      %s89 = sadd.s32 %s88, 1
      %s90 = scalar_select %p87, %s88, %s89
      %p93 = pneg %p87
      %p94 = scmp.eq.s32.totalorder %s23, 1
      %p95 = por %p93, %p94
      %p96 = scmp.ne.s32.totalorder %s88, %s91
      %p97 = scmp.eq.s32.totalorder %s23, 0
      %p98 = por %p96, %p97
      %p99 = scmp.ne.s32.totalorder %s88, %s91
      %p100 = scmp.eq.s32.totalorder %s28, 1
      %p101 = por %p99, %p100
      %p102 = scmp.ne.s32.totalorder %s91, %s92
      %p103 = scmp.eq.s32.totalorder %s28, 0
      %p104 = por %p102, %p103
      %p105 = scmp.ne.s32.totalorder %s91, %s92
      %p106 = scmp.eq.s32.totalorder %s29, 1
      %p107 = por %p105, %p106
      %p109 = scmp.ne.s32.totalorder %s92, %s108
      %p110 = scmp.eq.s32.totalorder %s29, 0
      %p111 = por %p109, %p110
      %s113 = sadd.s32 %s112, 1
      %p116 = scmp.eq.s32.totalorder %s23, 1
      %p117 = scmp.ne.s32.totalorder %s112, %s114
      %p118 = scmp.eq.s32.totalorder %s23, 0
      %p119 = por %p117, %p118
      %p120 = scmp.ne.s32.totalorder %s112, %s114
      %p121 = scmp.eq.s32.totalorder %s28, 1
      %p122 = por %p120, %p121
      %p123 = scmp.ne.s32.totalorder %s114, %s115
      %p124 = scmp.eq.s32.totalorder %s28, 0
      %p125 = por %p123, %p124
      %p126 = scmp.ne.s32.totalorder %s114, %s115
      %p127 = scmp.eq.s32.totalorder %s29, 1
      %p128 = por %p126, %p127
      %p130 = scmp.ne.s32.totalorder %s115, %s129
      %p131 = scmp.eq.s32.totalorder %s29, 0
      %p132 = por %p130, %p131
      %s133 = smul.u32 %s32, %s31
      %s134 = smul.u32 %s41, %s45
      %s135 = ssub.s32 %s133, %s134
      %p136 = scmp.eq.s32.totalorder %s135, 0
      %s138 = sadd.s32 %s137, 1
      %s139 = scalar_select %p136, %s137, %s138
      %p142 = pneg %p136
      %p143 = scmp.eq.s32.totalorder %s23, 1
      %p144 = por %p142, %p143
      %p145 = scmp.ne.s32.totalorder %s137, %s140
      %p146 = scmp.eq.s32.totalorder %s23, 0
      %p147 = por %p145, %p146
      %p148 = scmp.ne.s32.totalorder %s137, %s140
      %p149 = scmp.eq.s32.totalorder %s28, 1
      %p150 = por %p148, %p149
      %p151 = scmp.ne.s32.totalorder %s140, %s141
      %p152 = scmp.eq.s32.totalorder %s28, 0
      %p153 = por %p151, %p152
      %p154 = scmp.ne.s32.totalorder %s140, %s141
      %p155 = scmp.eq.s32.totalorder %s29, 1
      %p156 = por %p154, %p155
      %p158 = scmp.ne.s32.totalorder %s141, %s157
      %p159 = scmp.eq.s32.totalorder %s29, 0
      %p160 = por %p158, %p159
      %s161 = smul.u32 %s32, %s31
      %s162 = smul.u32 %s41, %s45
      %s163 = ssub.s32 %s161, %s162
      %p164 = scmp.eq.s32.totalorder %s163, 0
      %s166 = sadd.s32 %s165, 1
      %s167 = scalar_select %p164, %s165, %s166
      %p170 = pneg %p164
      %p171 = scmp.eq.s32.totalorder %s23, 1
      %p172 = por %p170, %p171
      %p173 = scmp.ne.s32.totalorder %s165, %s168
      %p174 = scmp.eq.s32.totalorder %s23, 0
      %p175 = por %p173, %p174
      %p176 = scmp.ne.s32.totalorder %s165, %s168
      %p177 = scmp.eq.s32.totalorder %s28, 1
      %p178 = por %p176, %p177
      %p179 = scmp.ne.s32.totalorder %s168, %s169
      %p180 = scmp.eq.s32.totalorder %s28, 0
      %p181 = por %p179, %p180
      %p182 = scmp.ne.s32.totalorder %s168, %s169
      %p183 = scmp.eq.s32.totalorder %s29, 1
      %p184 = por %p182, %p183
      %p186 = scmp.ne.s32.totalorder %s169, %s185
      %p187 = scmp.eq.s32.totalorder %s29, 0
      %p188 = por %p186, %p187
      %s189 = ssub.s32 %s30, %s49
      %p190 = scmp.eq.s32.totalorder %s189, 0
      %s192 = sadd.s32 %s191, 1
      %s193 = scalar_select %p190, %s191, %s192
      %p196 = pneg %p190
      %p197 = scmp.eq.s32.totalorder %s23, 1
      %p198 = por %p196, %p197
      %p199 = scmp.ne.s32.totalorder %s191, %s194
      %p200 = scmp.eq.s32.totalorder %s23, 0
      %p201 = por %p199, %p200
      %p202 = scmp.ne.s32.totalorder %s191, %s194
      %p203 = scmp.eq.s32.totalorder %s28, 1
      %p204 = por %p202, %p203
      %p205 = scmp.ne.s32.totalorder %s194, %s195
      %p206 = scmp.eq.s32.totalorder %s28, 0
      %p207 = por %p205, %p206
      %p208 = scmp.ne.s32.totalorder %s194, %s195
      %p209 = scmp.eq.s32.totalorder %s29, 1
      %p210 = por %p208, %p209
      %p212 = scmp.ne.s32.totalorder %s195, %s211
      %p213 = scmp.eq.s32.totalorder %s29, 0
      %p214 = por %p212, %p213
      %s215 = smul.u32 %s32, %s31
      %s216 = smul.u32 %s41, %s45
      %s217 = ssub.s32 %s30, %s49
      %s218 = ssub.s32 %s215, %s216
      %s219 = sor.u32 %s217, %s218
      %p220 = scmp.eq.s32.totalorder %s219, 0
      %s222 = sadd.s32 %s221, 1
      %s223 = scalar_select %p220, %s221, %s222
      %p226 = pneg %p220
      %p227 = scmp.eq.s32.totalorder %s23, 1
      %p228 = por %p226, %p227
      %p229 = scmp.ne.s32.totalorder %s221, %s224
      %p230 = scmp.eq.s32.totalorder %s23, 0
      %p231 = por %p229, %p230
      %p232 = scmp.ne.s32.totalorder %s221, %s224
      %p233 = scmp.eq.s32.totalorder %s28, 1
      %p234 = por %p232, %p233
      %p235 = scmp.ne.s32.totalorder %s224, %s225
      %p236 = scmp.eq.s32.totalorder %s28, 0
      %p237 = por %p235, %p236
      %p238 = scmp.ne.s32.totalorder %s224, %s225
      %p239 = scmp.eq.s32.totalorder %s29, 1
      %p240 = por %p238, %p239
      %p242 = scmp.ne.s32.totalorder %s225, %s241
      %p243 = scmp.eq.s32.totalorder %s29, 0
      %p244 = por %p242, %p243
      %p245 = scmp.le.s32.totalorder 1, %s23
      %p246 = scmp.lt.s32.totalorder %s23, 3
      %p247 = pnand %p245, %p246
      %p248 = pneg %p247
      // Predicated region
      $region9: #{tpu_custom_call.1} parent=5 // pred_check
        _
      $region10: #{tpu_custom_call.1} parent=5 // pred_check_branch
        %250 = sbr.rel (%p247) target = $region12
      $region11: #{tpu_custom_call.1} parent=5 // pred_region
        %s251 = ssub.s32 %s23, 1
        // Predicated region
        $region13: #{tpu_custom_call.1} parent=11 // pred_check
          %p252 = pneg %p125
        $region14: #{tpu_custom_call.1} parent=11 // pred_check_branch
          %254 = sbr.rel (%p252) target = $region16
        $region15: #{tpu_custom_call.1} parent=11 // pred_region
          _
        $region16: #{tpu_custom_call.1} parent=11 // pred_fallthru
          _
      $region12: #{tpu_custom_call.1} parent=5 // pred_fallthru
        _
      %p255 = scmp.lt.s32.totalorder %s23, 2
      // Predicated region
      $region17: #{tpu_custom_call.1} parent=5 // pred_check
        %p256 = pneg %p255
      $region18: #{tpu_custom_call.1} parent=5 // pred_check_branch
        %258 = sbr.rel (%p256) target = $region20
      $region19: #{tpu_custom_call.1} parent=5 // pred_region
        // Predicated region
        $region21: #{tpu_custom_call.1} parent=19 // pred_check
          %p259 = pneg %p68
        $region22: #{tpu_custom_call.1} parent=19 // pred_check_branch
          %261 = sbr.rel (%p259) target = $region24
        $region23: #{tpu_custom_call.1} parent=19 // pred_region
          %s262 = sand.u32 %s58, 1
          %s263 = scalar_lea.sflag [#allocation4], %s262
          %s264 = sand.u32 %s58, 1
          %s265 = smul.addr %s264, 2
          %s266 = scalar_lea.vmem [#allocation3], %s265
          %s267 = ssub.s32 1, %s31
          %s268 = smul.u32 %s32, %s267
          %s270 = ssub.s32 32, 32
          %271 = vsyncadd %s263, %s270
          %s272 = sadd.s32 %s268, %s30
          %s273 = smul.addr %s272, 32
          %s274 = scalar_lea.hbm %s0, %s273
          %s276 = sshll.u32 %s266, 4
          %s277 = int_to_ptr.vmem [resolvable:$true] %s276
          %279 = dma.hbm_to_vmem [thread:$0]  %s274, 32, %s277, %s263
        $region24: #{tpu_custom_call.1} parent=19 // pred_fallthru
          _
        // Predicated region
        $region25: #{tpu_custom_call.1} parent=19 // pred_check
          %p280 = pneg %p98
        $region26: #{tpu_custom_call.1} parent=19 // pred_check_branch
          %282 = sbr.rel (%p280) target = $region28
        $region27: #{tpu_custom_call.1} parent=19 // pred_region
          %s283 = sand.u32 %s23, 1
          %s284 = scalar_lea.sflag [#allocation7], %s283
          %s285 = sand.u32 %s88, 1
          %s286 = smul.addr %s285, 32
          %s287 = scalar_lea.vmem [#allocation6], %s286
          %s288 = ssub.s32 1, %s31
          %s289 = smul.u32 %s32, %s288
          %s290 = smul.u32 4, %s289
          %s292 = ssub.s32 512, 512
          %293 = vsyncadd %s284, %s292
          %s294 = smul.addr %s290, 128
          %s295 = scalar_lea.hbm %s1, %s294
          %s296 = sshll.u32 %s287, 4
          %s297 = int_to_ptr.vmem [resolvable:$true] %s296
          %302 = dma.hbm_to_vmem [thread:$0]  %s295, 512, %s297, %s284, 128, 128, 8
        $region28: #{tpu_custom_call.1} parent=19 // pred_fallthru
          _
        // Predicated region
        $region29: #{tpu_custom_call.1} parent=19 // pred_check
          %p303 = pneg %p147
        $region30: #{tpu_custom_call.1} parent=19 // pred_check_branch
          %305 = sbr.rel (%p303) target = $region32
        $region31: #{tpu_custom_call.1} parent=19 // pred_region
          %s306 = sand.u32 %s23, 1
          %s307 = scalar_lea.sflag [#allocation7], %s306
          %s308 = sand.u32 %s137, 1
          %s309 = smul.addr %s308, 32
          %s310 = scalar_lea.vmem [#allocation8], %s309
          %s311 = smul.u32 %s32, %s31
          %s313 = ssub.s32 512, 512
          %314 = vsyncadd %s307, %s313
          %s315 = smul.addr %s311, 128
          %s316 = scalar_lea.hbm %s3, %s315
          %s317 = sshll.u32 %s310, 4
          %s318 = int_to_ptr.vmem [resolvable:$true] %s317
          %323 = dma.hbm_to_vmem [thread:$0]  %s316, 512, %s318, %s307, 128, 128, 8
        $region32: #{tpu_custom_call.1} parent=19 // pred_fallthru
          _
        // Predicated region
        $region33: #{tpu_custom_call.1} parent=19 // pred_check
          %p324 = pneg %p175
        $region34: #{tpu_custom_call.1} parent=19 // pred_check_branch
          %326 = sbr.rel (%p324) target = $region36
        $region35: #{tpu_custom_call.1} parent=19 // pred_region
          %s327 = smul.u32 %s32, %s31
          %p328 = scmp.lt.s32.totalorder %s327, 0
          %s329 = scalar_select %p328, %s327, 0
          %s330 = scalar_lea.vmem %s4, %s329
          %s331 = smul.u32 %s32, %s31
        $region36: #{tpu_custom_call.1} parent=19 // pred_fallthru
          _
      $region20: #{tpu_custom_call.1} parent=5 // pred_fallthru
        _
      %p332 = scmp.le.s32.totalorder 1, %s23
      %p333 = scmp.lt.s32.totalorder %s23, 3
      %p334 = pnand %p332, %p333
      %p335 = pneg %p334
      // Predicated region
      $region37: #{tpu_custom_call.1} parent=5 // pred_check
        _
      $region38: #{tpu_custom_call.1} parent=5 // pred_check_branch
        %337 = sbr.rel (%p334) target = $region40
      $region39: #{tpu_custom_call.1} parent=5 // pred_region
        %s338 = ssub.s32 %s23, 1
        %s339 = sand.u32 %s61, 1
        %s340 = scalar_lea.sflag [#allocation4], %s339
        %s341 = sand.u32 %s61, 1
        %s342 = smul.addr %s341, 2
        %s343 = scalar_lea.vmem [#allocation3], %s342
        // Predicated region
        $region41: #{tpu_custom_call.1} parent=39 // pred_check
          %p344 = pneg %p74
        $region42: #{tpu_custom_call.1} parent=39 // pred_check_branch
          %346 = sbr.rel (%p344) target = $region44
        $region43: #{tpu_custom_call.1} parent=39 // pred_region
          %347 = dma.done %s340, 32
        $region44: #{tpu_custom_call.1} parent=39 // pred_fallthru
          _
        %s348 = sand.u32 %s28, 1
        %s349 = scalar_lea.sflag [#allocation7], %s348
        %s350 = sand.u32 %s91, 1
        %s351 = smul.addr %s350, 32
        %s352 = scalar_lea.vmem [#allocation6], %s351
        // Predicated region
        $region45: #{tpu_custom_call.1} parent=39 // pred_check
          %p353 = pneg %p104
        $region46: #{tpu_custom_call.1} parent=39 // pred_check_branch
          %355 = sbr.rel (%p353) target = $region48
        $region47: #{tpu_custom_call.1} parent=39 // pred_region
          %356 = dma.done %s349, 512
        $region48: #{tpu_custom_call.1} parent=39 // pred_fallthru
          _
        %s357 = sand.u32 %s28, 1
        %s358 = scalar_lea.sflag [#allocation7], %s357
        %s359 = sand.u32 %s140, 1
        %s360 = smul.addr %s359, 32
        %s361 = scalar_lea.vmem [#allocation8], %s360
        // Predicated region
        $region49: #{tpu_custom_call.1} parent=39 // pred_check
          %p362 = pneg %p153
        $region50: #{tpu_custom_call.1} parent=39 // pred_check_branch
          %364 = sbr.rel (%p362) target = $region52
        $region51: #{tpu_custom_call.1} parent=39 // pred_region
          %365 = dma.done %s358, 512
        $region52: #{tpu_custom_call.1} parent=39 // pred_fallthru
          _
        %s366 = sand.u32 %s61, 1
        %s367 = scalar_lea.sflag [#allocation4], %s366
        %s368 = sand.u32 %s61, 1
        %s369 = smul.addr %s368, 2
        %s370 = scalar_lea.vmem [#allocation3], %s369
        %p371 = pneg %p74
        %p372 = pneg %p71
        %s373 = sand.u32 %s28, 1
        %s374 = scalar_lea.sflag [#allocation7], %s373
        %s375 = sand.u32 %s91, 1
        %s376 = smul.addr %s375, 32
        %s377 = scalar_lea.vmem [#allocation6], %s376
        %p378 = pneg %p104
        %p379 = pneg %p101
        %p380 = pneg %p125
        %p381 = pneg %p122
        %s382 = sand.u32 %s28, 1
        %s383 = scalar_lea.sflag [#allocation7], %s382
        %s384 = sand.u32 %s140, 1
        %s385 = smul.addr %s384, 32
        %s386 = scalar_lea.vmem [#allocation8], %s385
        %p387 = pneg %p153
        %p388 = pneg %p150
        %s389 = smul.u32 %s35, %s34
        %p390 = scmp.lt.s32.totalorder %s389, 0
        %s391 = scalar_select %p390, %s389, 0
        %s392 = scalar_lea.vmem %s4, %s391
        %p393 = pneg %p181
        %p394 = pneg %p178
        %p395 = pneg %p207
        %p396 = pneg %p204
        %p397 = pneg %p237
        %p398 = pneg %p234
        %s399 = sand.u32 %s224, 1
        %s400 = scalar_lea.sflag [#allocation11], %s399
        %s401 = sand.u32 %s224, 1
        %s402 = smul.addr %s401, 2
        %s403 = scalar_lea.vmem [#allocation10], %s402
        %s404 = ssub.s32 1, %s34
        %s405 = smul.u32 %s35, %s404
        %s406 = ssub.s32 1, %s34
        %s407 = smul.u32 %s35, %s406
        %s408 = smul.u32 4, %s407
        %s409 = smul.u32 %s35, %s34
        %s410 = smul.u32 %s35, %s34
        %p411 = scmp.lt.s32.totalorder %s410, 0
        %s412 = scalar_select %p411, %s410, 0
        %s413 = scalar_lea.vmem %s4, %s412
        %s414 = smul.u32 %s35, %s34
        %s415 = smul.u32 %s35, %s34
        %p416 = scmp.eq.s32.totalorder %s34, 0
        %p417 = scmp.eq.s32.totalorder %s35, 0
        %p418 = pnand %p416, %p417
        %p419 = pneg %p418
        // Predicated region
        $region53: #{tpu_custom_call.1} parent=39 // pred_check
          _
        $region54: #{tpu_custom_call.1} parent=39 // pred_check_branch
          %421 = sbr.rel (%p418) target = $region56
        $region55: #{tpu_custom_call.1} parent=39 // pred_region
          %vm422 = vcmask 254976
          %423 = vst.msk [vmem:[#allocation2] sm:$0x3] %vm422, 0.0
        $region56: #{tpu_custom_call.1} parent=39 // pred_fallthru
          _
        // Predicated region
        $region57: #{tpu_custom_call.1} parent=39 // pred_check
          %p424 = pneg %p416
        $region58: #{tpu_custom_call.1} parent=39 // pred_check_branch
          %426 = sbr.rel (%p424) target = $region60
        $region59: #{tpu_custom_call.1} parent=39 // pred_region
          %v427 = vld [vmem:[#allocation2] sm:$0x3]
          %v428 = vld [vmem:[%s343] sm:$0x3]
          %v429 = vld [vmem:[%s352] sm:$0xff]
          %v430 = vld [vmem:[%s352 + $0x8] sm:$0xff]
          %v431 = vld [vmem:[%s352 + $0x10] sm:$0xff]
          %v432 = vld [vmem:[%s352 + $0x18] sm:$0xff]
          %vm433 = vcmask 261120
          %v435 = vsel %vm433, %v428, 0
          %437 = vmatprep.subr.mxu0 0.0
          %438 = vmatpush1.msra.mxu0 %v429
          %439 = vmatprep.subr.mxu0 0.0
          %440 = vmatpush1.msra.mxu0 %v430
          %441 = vmatprep.subr.mxu0 0.0
          %442 = vmatpush1.msra.mxu0 %v431
          %443 = vmatprep.subr.mxu0 0.0
          %444 = vmatpush1.msra.mxu0 %v432
          %445 = vmatprep.subr.mxu0 0.0
          %446 = vmatpush1.msra.mxu0 0.0
          %447 = vmatprep.subr.mxu0 0.0
          %448 = vmatpush1.msra.mxu0 0.0
          %449 = vmatprep.subr.mxu0 0.0
          %450 = vmatpush1.msra.mxu0 0.0
          %451 = vmatprep.subr.mxu0 0.0
          %452 = vmatpush1.msra.mxu0 0.0
          %453 = vmatprep.subr.mxu0 0.0
          %454 = vmatpush1.msra.mxu0 0.0
          %455 = vmatprep.subr.mxu0 0.0
          %456 = vmatpush1.msra.mxu0 0.0
          %457 = vmatprep.subr.mxu0 0.0
          %458 = vmatpush1.msra.mxu0 0.0
          %459 = vmatprep.subr.mxu0 0.0
          %460 = vmatpush1.msra.mxu0 0.0
          %461 = vmatprep.subr.mxu0 0.0
          %462 = vmatpush1.msra.mxu0 0.0
          %463 = vmatprep.subr.mxu0 0.0
          %464 = vmatpush1.msra.mxu0 0.0
          %465 = vmatprep.subr.mxu0 0.0
          %466 = vmatpush1.msra.mxu0 0.0
          %467 = vmatprep.subr.mxu0 0.0
          %468 = vmatpush1.msra.mxu0 0.0
          %469 = vmatprep.subr.mxu0 0.0
          %470 = vmatpush1.msra.mxu0 0.0
          %471 = vmatprep.subr.mxu0 0.0
          %472 = vmatpush1.msra.mxu0 0.0
          %473 = vmatprep.subr.mxu0 0.0
          %474 = vmatpush1.msra.mxu0 0.0
          %475 = vmatprep.subr.mxu0 0.0
          %476 = vmatpush1.msra.mxu0 0.0
          %477 = vmatprep.subr.mxu0 0.0
          %478 = vmatpush1.msra.mxu0 0.0
          %479 = vmatprep.subr.mxu0 0.0
          %480 = vmatpush1.msra.mxu0 0.0
          %481 = vmatprep.subr.mxu0 0.0
          %482 = vmatpush1.msra.mxu0 0.0
          %483 = vmatprep.subr.mxu0 0.0
          %484 = vmatpush1.msra.mxu0 0.0
          %485 = vmatprep.subr.mxu0 0.0
          %486 = vmatpush1.msra.mxu0 0.0
          %487 = vmatprep.subr.mxu0 0.0
          %488 = vmatpush1.msra.mxu0 0.0
          %489 = vmatprep.subr.mxu0 0.0
          %490 = vmatpush1.msra.mxu0 0.0
          %491 = vmatprep.subr.mxu0 0.0
          %492 = vmatpush1.msra.mxu0 0.0
          %493 = vmatprep.subr.mxu0 0.0
          %494 = vmatpush1.msra.mxu0 0.0
          %495 = vmatprep.subr.mxu0 0.0
          %496 = vmatpush1.msra.mxu0 0.0
          %497 = vmatprep.subr.mxu0 0.0
          %498 = vmatpush1.msra.mxu0 0.0
          %499 = vmatprep.subr.mxu0 0.0
          %500 = vmatpush1.msra.mxu0 0.0
          %501 = vmatprep.mubr.f32.mxu0 0.0
          %502 = vmatmul.mubr.f32.gmra.mrb[0].mxu0 %v435
          %v503 = vpop.f32.mrb[0].mxu0
          %v504 = vadd.f32 0.0, %v503
          %v505 = vpop.f32.mrb[0].mxu0
          %506 = vdwg.mxu0
          %v507 = vadd.f32 %v427, %v504
          %vm508 = vcmask 254976
          %509 = vst.msk [vmem:[#allocation2] sm:$0x3] %vm508, %v507
        $region60: #{tpu_custom_call.1} parent=39 // pred_fallthru
          _
        // Predicated region
        $region61: #{tpu_custom_call.1} parent=39 // pred_check
          _
        $region62: #{tpu_custom_call.1} parent=39 // pred_check_branch
          %511 = sbr.rel (%p418) target = $region64
        $region63: #{tpu_custom_call.1} parent=39 // pred_region
          %v512 = vld [vmem:[#allocation2] sm:$0x3]
          %v513 = vld [vmem:[%s2] sm:$0x1]
          %v515 = vlaneseq
          %v516 = vshrl.u32 %v515, 7
          %v517 = vsub.s32 0, %v516
          %v518 = vrot.slane %v513, %v517
          %v520 = vadd.f32 %v512, %v518
          %vm521 = vcmask 254976
          %522 = vst.msk [vmem:[#allocation2] sm:$0x3] %vm521, %v520
          %523 = vst.msk [vmem:[#allocation9] sm:$0x3] %vm521, %v520
        $region64: #{tpu_custom_call.1} parent=39 // pred_fallthru
          _
        %p524 = scmp.eq.s32.totalorder %s34, 1
        // Predicated region
        $region65: #{tpu_custom_call.1} parent=39 // pred_check
          %p525 = pneg %p524
        $region66: #{tpu_custom_call.1} parent=39 // pred_check_branch
          %527 = sbr.rel (%p525) target = $region68
        $region67: #{tpu_custom_call.1} parent=39 // pred_region
          %v528 = vld [vmem:[#allocation2] sm:$0x3]
          %v529 = vld [vmem:[%s361] sm:$0xff]
          %v530 = vld [vmem:[%s361 + $0x8] sm:$0xff]
          %v531 = vld [vmem:[%s361 + $0x10] sm:$0xff]
          %v532 = vld [vmem:[%s361 + $0x18] sm:$0xff]
          %v533 = vld [vmem:[%s413] sm:$0x1]
          %v535 = vlaneseq
          %v536 = vshrl.u32 %v535, 7
          %v537 = vsub.s32 0, %v536
          %v538 = vrot.slane %v533, %v537
          %vm540 = vcmask 261120
          %v542 = vsel %vm540, %v528, 0
          %544 = vmatprep.subr.mxu0 0.0
          %545 = vmatpush1.msra.mxu0 %v529
          %546 = vmatprep.subr.mxu0 0.0
          %547 = vmatpush1.msra.mxu0 %v530
          %548 = vmatprep.subr.mxu0 0.0
          %549 = vmatpush1.msra.mxu0 %v531
          %550 = vmatprep.subr.mxu0 0.0
          %551 = vmatpush1.msra.mxu0 %v532
          %552 = vmatprep.subr.mxu0 0.0
          %553 = vmatpush1.msra.mxu0 0.0
          %554 = vmatprep.subr.mxu0 0.0
          %555 = vmatpush1.msra.mxu0 0.0
          %556 = vmatprep.subr.mxu0 0.0
          %557 = vmatpush1.msra.mxu0 0.0
          %558 = vmatprep.subr.mxu0 0.0
          %559 = vmatpush1.msra.mxu0 0.0
          %560 = vmatprep.subr.mxu0 0.0
          %561 = vmatpush1.msra.mxu0 0.0
          %562 = vmatprep.subr.mxu0 0.0
          %563 = vmatpush1.msra.mxu0 0.0
          %564 = vmatprep.subr.mxu0 0.0
          %565 = vmatpush1.msra.mxu0 0.0
          %566 = vmatprep.subr.mxu0 0.0
          %567 = vmatpush1.msra.mxu0 0.0
          %568 = vmatprep.subr.mxu0 0.0
          %569 = vmatpush1.msra.mxu0 0.0
          %570 = vmatprep.subr.mxu0 0.0
          %571 = vmatpush1.msra.mxu0 0.0
          %572 = vmatprep.subr.mxu0 0.0
          %573 = vmatpush1.msra.mxu0 0.0
          %574 = vmatprep.subr.mxu0 0.0
          %575 = vmatpush1.msra.mxu0 0.0
          %576 = vmatprep.subr.mxu0 0.0
          %577 = vmatpush1.msra.mxu0 0.0
          %578 = vmatprep.subr.mxu0 0.0
          %579 = vmatpush1.msra.mxu0 0.0
          %580 = vmatprep.subr.mxu0 0.0
          %581 = vmatpush1.msra.mxu0 0.0
          %582 = vmatprep.subr.mxu0 0.0
          %583 = vmatpush1.msra.mxu0 0.0
          %584 = vmatprep.subr.mxu0 0.0
          %585 = vmatpush1.msra.mxu0 0.0
          %586 = vmatprep.subr.mxu0 0.0
          %587 = vmatpush1.msra.mxu0 0.0
          %588 = vmatprep.subr.mxu0 0.0
          %589 = vmatpush1.msra.mxu0 0.0
          %590 = vmatprep.subr.mxu0 0.0
          %591 = vmatpush1.msra.mxu0 0.0
          %592 = vmatprep.subr.mxu0 0.0
          %593 = vmatpush1.msra.mxu0 0.0
          %594 = vmatprep.subr.mxu0 0.0
          %595 = vmatpush1.msra.mxu0 0.0
          %596 = vmatprep.subr.mxu0 0.0
          %597 = vmatpush1.msra.mxu0 0.0
          %598 = vmatprep.subr.mxu0 0.0
          %599 = vmatpush1.msra.mxu0 0.0
          %600 = vmatprep.subr.mxu0 0.0
          %601 = vmatpush1.msra.mxu0 0.0
          %602 = vmatprep.subr.mxu0 0.0
          %603 = vmatpush1.msra.mxu0 0.0
          %604 = vmatprep.subr.mxu0 0.0
          %605 = vmatpush1.msra.mxu0 0.0
          %606 = vmatprep.subr.mxu0 0.0
          %607 = vmatpush1.msra.mxu0 0.0
          %608 = vmatprep.mubr.f32.mxu0 0.0
          %609 = vmatmul.mubr.f32.gmra.mrb[0].mxu0 %v542
          %v610 = vpop.f32.mrb[0].mxu0
          %v611 = vadd.f32 %v538, %v610
          %v612 = vpop.f32.mrb[0].mxu0
          %613 = vdwg.mxu0
          %vm614 = vcmask 254976
          %615 = vst.msk [vmem:[%s403] sm:$0x3] %vm614, %v611
        $region68: #{tpu_custom_call.1} parent=39 // pred_fallthru
          _
        %s616 = sand.u32 %s224, 1
        %s617 = scalar_lea.sflag [#allocation11], %s616
        %s618 = sand.u32 %s224, 1
        %s619 = smul.addr %s618, 2
        %s620 = scalar_lea.vmem [#allocation10], %s619
        // Predicated region
        $region69: #{tpu_custom_call.1} parent=39 // pred_check
          %p621 = pneg %p204
        $region70: #{tpu_custom_call.1} parent=39 // pred_check_branch
          %623 = sbr.rel (%p621) target = $region72
        $region71: #{tpu_custom_call.1} parent=39 // pred_region
          %s625 = ssub.s32 32, 32
          %626 = vsyncadd [#allocation5], %s625
          %s627 = smul.addr %s33, 32
          %s628 = scalar_lea.hbm %s5, %s627
          %s630 = sshll.u32 [#allocation9], 4
          %s631 = int_to_ptr.vmem [resolvable:$true] %s630
          %633 = dma.vmem_to_hbm [thread:$0]  %s631, 32, %s628, [#allocation5]
        $region72: #{tpu_custom_call.1} parent=39 // pred_fallthru
          _
        // Predicated region
        $region73: #{tpu_custom_call.1} parent=39 // pred_check
          %p634 = pneg %p234
        $region74: #{tpu_custom_call.1} parent=39 // pred_check_branch
          %636 = sbr.rel (%p634) target = $region76
        $region75: #{tpu_custom_call.1} parent=39 // pred_region
          %s637 = smul.u32 %s35, %s34
          %s639 = ssub.s32 32, 32
          %640 = vsyncadd %s617, %s639
          %s641 = sadd.s32 %s637, %s33
          %s642 = smul.addr %s641, 32
          %s643 = scalar_lea.hbm %s6, %s642
          %s645 = sshll.u32 %s620, 4
          %s646 = int_to_ptr.vmem [resolvable:$true] %s645
          %648 = dma.vmem_to_hbm [thread:$0]  %s646, 32, %s643, %s617
        $region76: #{tpu_custom_call.1} parent=39 // pred_fallthru
          _
        // Predicated region
        $region77: #{tpu_custom_call.1} parent=39 // pred_check
          %p649 = pneg %p204
        $region78: #{tpu_custom_call.1} parent=39 // pred_check_branch
          %651 = sbr.rel (%p649) target = $region80
        $region79: #{tpu_custom_call.1} parent=39 // pred_region
          %652 = dma.done [#allocation5], 32
        $region80: #{tpu_custom_call.1} parent=39 // pred_fallthru
          _
      $region40: #{tpu_custom_call.1} parent=5 // pred_fallthru
        _
      %p653 = scmp.le.s32.totalorder 2, %s23
      // Predicated region
      $region81: #{tpu_custom_call.1} parent=5 // pred_check
        %p654 = pneg %p653
      $region82: #{tpu_custom_call.1} parent=5 // pred_check_branch
        %656 = sbr.rel (%p654) target = $region84
      $region83: #{tpu_custom_call.1} parent=5 // pred_region
        %s657 = ssub.s32 %s23, 2
        // Predicated region
        $region85: #{tpu_custom_call.1} parent=83 // pred_check
          %p658 = pneg %p240
        $region86: #{tpu_custom_call.1} parent=83 // pred_check_branch
          %660 = sbr.rel (%p658) target = $region88
        $region87: #{tpu_custom_call.1} parent=83 // pred_region
          %s661 = sand.u32 %s225, 1
          %s662 = scalar_lea.sflag [#allocation11], %s661
          %s663 = sand.u32 %s225, 1
          %s664 = smul.addr %s663, 2
          %s665 = scalar_lea.vmem [#allocation10], %s664
          %666 = dma.done %s662, 32
        $region88: #{tpu_custom_call.1} parent=83 // pred_fallthru
          _
      $region84: #{tpu_custom_call.1} parent=5 // pred_fallthru
        _
    $region6: #{tpu_custom_call.1} parent=1 // loop_footer
      %s27 = sadd.s32 1, %s23
    $region7: #{tpu_custom_call.1} parent=1 // loop_footer_branch
      %22 = sbr.rel target = $region3
    $region8: #{tpu_custom_call.1} parent=1 // loop_exit
      _
    %667 = vsyncpa [#allocation4], 1
    %s668 = scalar_lea.sflag [#allocation4], 1
    %669 = vsyncpa %s668, 1
    %670 = vsyncpa [#allocation7], 1
    %s671 = scalar_lea.sflag [#allocation7], 1
    %672 = vsyncpa %s671, 1
    %673 = vsyncpa [#allocation5], 1
    %s674 = scalar_lea.sflag [#allocation5], 1
    %675 = vsyncpa %s674, 1
    %676 = vsyncpa [#allocation11], 1
    %s677 = scalar_lea.sflag [#allocation11], 1
    %678 = vsyncpa %s677, 1

</llo_original>
